<compile_context>
chip_gen: v7x
topology: tpu7x:2x2x1
jax: 0.10.0
libtpu: 0.0.40
codegen_flags: <defaults>
</compile_context>

<pallas_src>
import math

import jax
import jax.numpy as jnp
from jax.experimental import pallas as pl
from jax.experimental.pallas import tpu as pltpu


_TARGET_TILE_BYTES = 8 << 20   # per-x-tile target; 4x double-buffered ~= 32 MiB (< 64 MiB v7x)
_SMALL_INPUT_BYTES = 1 << 20   # below this, plain XLA multiply beats a pallas_call launch


def _scale_kernel(x_ref, w_ref, o_ref):
    # x_ref: (TB, TF), w_ref: (1, TF) -> broadcast multiply on the VPU.
    o_ref[...] = x_ref[...] * w_ref[...]


def _round_up(v: int, m: int) -> int:
    return ((v + m - 1) // m) * m


def scale_ensemble_forward(x: jax.Array, weight: jax.Array, *, force_pallas: bool = False) -> jax.Array:
    """x: (..., K, D), weight: (K, D). Returns x * weight (broadcast over leading dims)."""
    assert x.ndim >= 2
    k, d = weight.shape
    assert x.shape[-2:] == (k, d)

    # Cast the small (K, D) weight once outside the kernel so the in-kernel multiply
    # stays in x.dtype (no f32 promotion of the whole tile for bf16 activations).
    weight = weight.astype(x.dtype)
    itemsize = jnp.dtype(x.dtype).itemsize

    # Small-input fallback: launch cost + (8,128) tile padding dominate; XLA fuses
    # the elementwise multiply into neighboring ops for free.
    if not force_pallas and x.size * itemsize < _SMALL_INPUT_BYTES:
        return x * weight

    lead = x.shape[:-2]
    b = int(math.prod(lead)) if lead else 1
    f = k * d

    # Always lane-dense: (B, F) with F = K*D (zero-copy reshape). Sublane dim = batch rows.
    x2 = x.reshape(b, f)
    w2 = weight.reshape(1, f)

    sub = max(8, 32 // itemsize)      # sublane packing multiple (8 f32, 16 bf16, 32 int8)
    row_bytes = f * itemsize

    if sub * row_bytes <= _TARGET_TILE_BYTES:
        # Common case: whole rows per tile (F block == full array dim, always legal).
        tf = f
        tb_budget = max(sub, (_TARGET_TILE_BYTES // row_bytes) // sub * sub)
        if b <= sub:
            tb = b                    # single block equal to the full batch dim
        else:
            # >= 2 load-balanced batch blocks so both v7x TensorCores stream.
            n_blocks = max(2, pl.cdiv(b, tb_budget))
            tb = _round_up(pl.cdiv(b, n_blocks), sub)   # <= tb_budget by construction
    else:
        # Huge rows: tile the lane axis in 128-lane multiples instead of shrinking VMEM.
        tb = b if b < sub else sub
        tf = (_TARGET_TILE_BYTES // (max(tb, 1) * itemsize)) // 128 * 128
        tf = max(128, tf)
        if tf >= f:
            tf = f                    # whole row fits after all (small tb)

    nb = pl.cdiv(b, tb)
    nf = pl.cdiv(f, tf)
    grid = (nb, nf)

    # VMEM budget: x + out tiles double-buffered (4x), weight block double-buffered,
    # plus headroom. Tile sizing guarantees this stays well under v7x's 64 MiB.
    need = 4 * tb * tf * itemsize + 2 * tf * itemsize + (2 << 20)
    vmem_limit = int(min(max(need, 32 << 20), 56 << 20))

    cost = pl.CostEstimate(
        flops=b * f,
        transcendentals=0,
        bytes_accessed=(2 * b * f + f) * itemsize,
    )

    out = pl.pallas_call(
        _scale_kernel,
        out_shape=jax.ShapeDtypeStruct((b, f), x.dtype),
        grid=grid,
        in_specs=[
            pl.BlockSpec((tb, tf), lambda i, j: (i, j)),   # x tile: lane-dense batch rows
            pl.BlockSpec((1, tf), lambda i, j: (0, j)),    # weight: resident across batch
        ],
        out_specs=pl.BlockSpec((tb, tf), lambda i, j: (i, j)),
        compiler_params=pltpu.CompilerParams(
            dimension_semantics=("parallel", "parallel"),
            vmem_limit_bytes=vmem_limit,
        ),
        cost_estimate=cost,
    )(x2, w2)

    return out.reshape(x.shape)


def init_scale_ensemble_weight(key, k: int, d: int, init: str) -> jax.Array:
    """Deterministic parameter init mirroring ScaleEnsemble.reset_parameters."""
    if init == "ones":
        return jnp.ones((k, d), jnp.float32)
    elif init == "normal":
        return jax.random.normal(key, (k, d), jnp.float32)
    elif init == "random-signs":
        bern = jax.random.bernoulli(key, 0.5, (k, d)).astype(jnp.float32)
        return bern * 2.0 - 1.0
    else:
        raise ValueError(f"Unknown weight_init: {init}")


if __name__ == "__main__":
    key = jax.random.PRNGKey(0)
    kx, kw, kx2 = jax.random.split(key, 3)

    # Small shapes consistent with forward: x is (..., K, D), weight is (K, D).
    B, K, D = 2, 8, 32
    x = jax.random.normal(kx, (B, K, D), jnp.float32)
    weight = init_scale_ensemble_weight(kw, K, D, init="random-signs")

    # Pallas path (forced so the kernel is exercised even at test-size inputs).
    out = jax.block_until_ready(scale_ensemble_forward(x, weight, force_pallas=True))
    ref = x * weight
    assert out.shape == x.shape
    assert jnp.allclose(out, ref, atol=1e-6, rtol=1e-6)

    # bf16 path (weight cast in wrapper) and extra leading dims, Pallas path.
    xb = jax.random.normal(kx2, (2, 3, K, D), jnp.bfloat16)
    outb = jax.block_until_ready(scale_ensemble_forward(xb, weight, force_pallas=True))
    refb = xb * weight.astype(jnp.bfloat16)
    assert outb.dtype == jnp.bfloat16 and outb.shape == xb.shape
    assert jnp.allclose(outb.astype(jnp.float32), refb.astype(jnp.float32),
                        atol=1e-2, rtol=1e-2)

    # Small-input fallback path (plain XLA multiply) must match too.
    out_small = jax.block_until_ready(scale_ensemble_forward(x, weight))
    assert jnp.allclose(out_small, ref, atol=1e-6, rtol=1e-6)

    print("KERNEL_OK")
</pallas_src>

<mosaic_0001>
module attributes {stable_mosaic.version = 11 : i64} {
  func.func @_scale_kernel(%arg0: i32, %arg1: i32, %arg2: memref<2x256xf32, #tpu.memory_space<vmem>>, %arg3: memref<1x256xf32, #tpu.memory_space<vmem>>, %arg4: memref<2x256xf32, #tpu.memory_space<vmem>>) attributes {dimension_semantics = [#tpu.dimension_semantics<parallel>, #tpu.dimension_semantics<parallel>], iteration_bounds = array<i64: 1, 1>, scalar_prefetch = 0 : i64, scratch_operands = 0 : i64, tpu.core_type = #tpu.core_type<tc>, window_params = [{transform_indices = @transform_0, window_bounds = array<i64: 2, 256>}, {transform_indices = @transform_1, window_bounds = array<i64: 1, 256>}, {transform_indices = @transform_2, window_bounds = array<i64: 2, 256>}]} {
    %c0 = arith.constant 0 : index
    %c0_0 = arith.constant 0 : index
    %0 = vector.load %arg2[%c0, %c0_0] : memref<2x256xf32, #tpu.memory_space<vmem>>, vector<2x256xf32>
    %c0_1 = arith.constant 0 : index
    %c0_2 = arith.constant 0 : index
    %1 = vector.load %arg3[%c0_1, %c0_2] : memref<1x256xf32, #tpu.memory_space<vmem>>, vector<1x256xf32>
    %2 = vector.broadcast %1 : vector<1x256xf32> to vector<2x256xf32>
    %3 = arith.mulf %0, %2 : vector<2x256xf32>
    %c0_3 = arith.constant 0 : index
    %c0_4 = arith.constant 0 : index
    %4 = vector.load %arg4[%c0_3, %c0_4] : memref<2x256xf32, #tpu.memory_space<vmem>>, vector<2x256xf32>
    tpu.vector_store %arg4[%c0_3, %c0_4], %3 {strides = array<i32>} : memref<2x256xf32, #tpu.memory_space<vmem>>, vector<2x256xf32>,
    return
  }
  func.func @transform_0(%arg0: i32, %arg1: i32) -> (i32, i32) {
    %c0_i32 = arith.constant 0 : i32
    return %arg0, %arg1 : i32, i32
  }
  func.func @transform_1(%arg0: i32, %arg1: i32) -> (i32, i32) {
    %c0_i32 = arith.constant 0 : i32
    %c0_i32_0 = arith.constant 0 : i32
    return %c0_i32, %arg1 : i32, i32
  }
  func.func @transform_2(%arg0: i32, %arg1: i32) -> (i32, i32) {
    %c0_i32 = arith.constant 0 : i32
    return %arg0, %arg1 : i32, i32
  }
}

</mosaic_0001>

<llo_original>
// kernel: tpu_custom_call.1
$region0: #{tpu_custom_call.1}
  #allocation0 [shape = 'u32[]', space=smem, size = 0x4, offset = 0x4, fixed_abs, tag = 'smem constant byte address 0x4 - core index']
  #allocation1 [shape = 'u32[144,128]{1,0:T(1,128)}', space=vmem, size = 0x12000, scoped, tag = 'internal scratch']
  %s0 = inlined_call_operand.hbm [shape: f32[2,256], index: 0, kind: input, shape index: {}]
  %s1 = inlined_call_operand.vmem [shape: f32[1,256], index: 1, kind: input, shape index: {}]
  %s2 = inlined_call_operand.hbm [shape: f32[2,256], index: 2, kind: output, shape index: {}]
  %s3 = sld [smem:[#allocation0]]
  $region22: #{tpu_custom_call.1} parent=0
    _
  %s5 = ssub.s32 1, %s3
  %s6 = scalar_select 0, %s5, %s3
  $region1: #{tpu_custom_call.1} parent=0
    #allocation2 [shape = 'u8[2048]{0}', space=vmem, size = 0x800, scoped, tag = 'input window, operand 0, single buffered']
    #allocation3 [shape = 's32[1]{0}', space=sflag, size = 0x4, scoped, tag = 'scoped memory for tpu_custom_call.1']
    #allocation4 [shape = 's32[1]{0}', space=sflag, size = 0x4, scoped, tag = 'scoped memory for tpu_custom_call.1']
    #allocation5 [shape = 'u8[2048]{0}', space=vmem, size = 0x800, scoped, tag = 'output window, operand 0, single buffered']
    %7 = vsyncpa [#allocation3], 0
    %8 = vsyncpa [#allocation4], 0
    // Predicated region
    $region2: #{tpu_custom_call.1} parent=1 // pred_check
      _
    $region3: #{tpu_custom_call.1} parent=1 // pred_check_branch
      %10 = sbr.rel (0) target = $region5
    $region4: #{tpu_custom_call.1} parent=1 // pred_region
      %s12 = ssub.s32 64, 64
      %13 = vsyncadd [#allocation3], %s12
      %s15 = sshll.u32 [#allocation2], 4
      %s16 = int_to_ptr.vmem [resolvable:$true] %s15
      %18 = dma.hbm_to_vmem [thread:$0]  %s0, 64, %s16, [#allocation3]
    $region5: #{tpu_custom_call.1} parent=1 // pred_fallthru
      _
    // Predicated region
    $region6: #{tpu_custom_call.1} parent=1 // pred_check
      _
    $region7: #{tpu_custom_call.1} parent=1 // pred_check_branch
      %20 = sbr.rel (0) target = $region9
    $region8: #{tpu_custom_call.1} parent=1 // pred_region
      _
    $region9: #{tpu_custom_call.1} parent=1 // pred_fallthru
      _
    // Predicated region
    $region10: #{tpu_custom_call.1} parent=1 // pred_check
      _
    $region11: #{tpu_custom_call.1} parent=1 // pred_check_branch
      %22 = sbr.rel (0) target = $region13
    $region12: #{tpu_custom_call.1} parent=1 // pred_region
      %23 = dma.done [#allocation3], 64
    $region13: #{tpu_custom_call.1} parent=1 // pred_fallthru
      _
    %v24 = vld [vmem:[#allocation2] sm:$0xf]
    %v25 = vld [vmem:[%s1] sm:$0x3]
    %v27 = vlaneseq
    %v28 = vshrl.u32 %v27, 7
    %v29 = vsub.s32 0, %v28
    %v30 = vrot.slane %v25, %v29
    %v31 = vlaneseq
    %v32 = vshrl.u32 %v31, 7
    %v33 = vsub.s32 1, %v32
    %v34 = vrot.slane %v25, %v33
    %v35 = vcombine.low %v30, %v34
    %v37 = vunpack.c.l.s4 1983009808
    %v38 = vunpack.c.0.s8 %v37
    %v39 = vlaneseq
    %v40 = vshrl.u32 %v39, 7
    %v41 = vsub.s32 %v38, %v40
    %v42 = vrot.slane %v35, %v41
    %v44 = vmul.f32 %v24, %v42
    %45 = vst [vmem:[#allocation5] sm:$0xf] %v44
    // Predicated region
    $region14: #{tpu_custom_call.1} parent=1 // pred_check
      _
    $region15: #{tpu_custom_call.1} parent=1 // pred_check_branch
      %47 = sbr.rel (0) target = $region17
    $region16: #{tpu_custom_call.1} parent=1 // pred_region
      %s49 = ssub.s32 64, 64
      %50 = vsyncadd [#allocation4], %s49
      %s52 = sshll.u32 [#allocation5], 4
      %s53 = int_to_ptr.vmem [resolvable:$true] %s52
      %55 = dma.vmem_to_hbm [thread:$0]  %s53, 64, %s2, [#allocation4]
    $region17: #{tpu_custom_call.1} parent=1 // pred_fallthru
      _
    // Predicated region
    $region18: #{tpu_custom_call.1} parent=1 // pred_check
      _
    $region19: #{tpu_custom_call.1} parent=1 // pred_check_branch
      %57 = sbr.rel (0) target = $region21
    $region20: #{tpu_custom_call.1} parent=1 // pred_region
      %58 = dma.done [#allocation4], 64
    $region21: #{tpu_custom_call.1} parent=1 // pred_fallthru
      _
    %59 = vsyncpa [#allocation3], 1
    %60 = vsyncpa [#allocation4], 1

</llo_original>
